<compile_context>
chip_gen: v6e
topology: v6e:2x2x1
jax: 0.10.0
libtpu: 0.0.40
codegen_flags: <defaults>
</compile_context>

<pallas_src>
import functools
import math

import jax
import jax.numpy as jnp
from jax.experimental import pallas as pl
from jax.experimental.pallas import tpu as pltpu


def _bilstm_kernel(x2d_ref, xrev2d_ref, wih_f_ref, wih_b_ref, whh_ref, b_ref,
                   out_ref, *, T, B, H):
    H2, H4, H6, H8 = 2 * H, 4 * H, 6 * H, 8 * H

    # ---- Hoisted input projection (bf16 MXU, f32 accumulate), both dirs. ----
    # Un-padded (nIn, 4H) weights, gate column order [i, f, o, g].
    gxf = jnp.dot(x2d_ref[...], wih_f_ref[...],
                  preferred_element_type=jnp.float32)        # (T*B, 4H)
    # Backward projection on the time-reversed input: row block s of gxb is
    # exactly the x[T-1-s] projection the backward chain needs at fused step s.
    gxb = jnp.dot(xrev2d_ref[...], wih_b_ref[...],
                  preferred_element_type=jnp.float32)        # (T*B, 4H)

    # One-time interleave into the fused gate-type-grouped layout
    # [i_f,i_b,f_f,f_b,o_f,o_b,g_f,g_b] and fold the (1, 8H) summed biases in.
    parts = []
    for k in range(4):
        parts.append(gxf[:, k * H:(k + 1) * H])
        parts.append(gxb[:, k * H:(k + 1) * H])
    gx_sum = jnp.concatenate(parts, axis=-1) + b_ref[...]    # (T*B, 8H) f32

    whh = whh_ref[...]                                        # (2H, 8H) bf16 block-diag

    h = jnp.zeros((B, H2), jnp.float32)                       # [h_fwd | h_bwd]
    c = jnp.zeros((B, H2), jnp.float32)                       # [c_fwd | c_bwd]

    # Fully unrolled time loop (T small here): one fused recurrent matmul and
    # one sigmoid + one tanh pass per step handle both directions.
    for s in range(T):
        gx = gx_sum[s * B:(s + 1) * B, :]
        if s == 0:
            gates = gx                                        # h == 0 at step 0
        else:
            gates = gx + jnp.dot(h.astype(jnp.bfloat16), whh,
                                 preferred_element_type=jnp.float32)
        sig = jax.nn.sigmoid(gates[:, 0:H6])                  # [i_f,i_b,f_f,f_b,o_f,o_b]
        g = jnp.tanh(gates[:, H6:H8])                         # [g_f,g_b]
        i = sig[:, 0:H2]
        f = sig[:, H2:H4]
        o = sig[:, H4:H6]
        c = f * c + i * g
        h = o * jnp.tanh(c)
        # Stream straight to the output (off the h->h chain):
        #   forward half  -> time-step s rows, cols [0, H)
        #   backward half -> time-step T-1-s rows, cols [H, 2H)
        out_ref[s * B:(s + 1) * B, 0:H] = h[:, 0:H].astype(out_ref.dtype)
        out_ref[(T - 1 - s) * B:(T - s) * B, H:H2] = h[:, H:H2].astype(out_ref.dtype)


def _reorder_ifog(w, H):
    """(..., 4H) PyTorch gate order [i,f,g,o] -> sigmoid-first [i,f,o,g]."""
    return jnp.concatenate(
        [w[..., 0:2 * H], w[..., 3 * H:4 * H], w[..., 2 * H:3 * H]], axis=-1)


def _interleave_pairs(a_f, a_b, H):
    """Two (..., 4H) in [i,f,o,g] order -> (..., 8H) [i_f,i_b,f_f,f_b,o_f,o_b,g_f,g_b]."""
    lead = a_f.shape[:-1]
    af = a_f.reshape(lead + (4, H))
    ab = a_b.reshape(lead + (4, H))
    return jnp.stack([af, ab], axis=-2).reshape(lead + (8 * H,))


def bilstm_pallas(x, params):
    """x: (T, B, nIn) float32. Returns (T, B, 2*H) float32."""
    T, B, n_in = x.shape
    H = params["whh_f"].shape[0]

    # Input-projection weights: un-padded, sigmoid-first column order, bf16.
    wih_f = _reorder_ifog(params["wih_f"], H).astype(jnp.bfloat16)   # (nIn, 4H)
    wih_b = _reorder_ifog(params["wih_b"], H).astype(jnp.bfloat16)   # (nIn, 4H)

    # Fused block-diagonal recurrent weight (2H, 8H), bf16.
    zh = jnp.zeros((H, 4 * H), jnp.float32)
    whh_fused = jnp.concatenate(
        [_interleave_pairs(_reorder_ifog(params["whh_f"], H), zh, H),
         _interleave_pairs(zh, _reorder_ifog(params["whh_b"], H), H)],
        axis=0).astype(jnp.bfloat16)

    # Fused summed biases (1, 8H), f32 (added once to the hoisted gx slab).
    b_fused = _interleave_pairs(_reorder_ifog(params["b_f"], H),
                                _reorder_ifog(params["b_b"], H), H)

    x2d = x.reshape(T * B, n_in).astype(jnp.bfloat16)
    xrev2d = x[::-1].reshape(T * B, n_in).astype(jnp.bfloat16)

    vmem = pl.BlockSpec(memory_space=pltpu.MemorySpace.VMEM)
    kernel = functools.partial(_bilstm_kernel, T=T, B=B, H=H)
    out2d = pl.pallas_call(
        kernel,
        out_shape=jax.ShapeDtypeStruct((T * B, 2 * H), jnp.float32),
        in_specs=[vmem] * 6,
        out_specs=vmem,
    )(x2d, xrev2d, wih_f, wih_b, whh_fused, b_fused)
    return out2d.reshape(T, B, 2 * H)


# ----------------------------------------------------------------------------
# Parameter construction (PyTorch-style uniform init) + pure-JAX references.
# ----------------------------------------------------------------------------
def init_params(key, n_in, n_hidden):
    k = 1.0 / math.sqrt(n_hidden)

    def u(key, shape):
        return jax.random.uniform(key, shape, jnp.float32, minval=-k, maxval=k)

    keys = jax.random.split(key, 8)
    params = {}
    for d, name in enumerate(("f", "b")):
        w_ih = u(keys[4 * d + 0], (4 * n_hidden, n_in))      # PyTorch (4H, nIn)
        w_hh = u(keys[4 * d + 1], (4 * n_hidden, n_hidden))  # PyTorch (4H, H)
        b_ih = u(keys[4 * d + 2], (4 * n_hidden,))
        b_hh = u(keys[4 * d + 3], (4 * n_hidden,))
        params[f"wih_{name}"] = w_ih.T                        # (nIn, 4H)
        params[f"whh_{name}"] = w_hh.T                        # (H, 4H)
        params[f"b_{name}"] = (b_ih + b_hh)[None, :]          # (1, 4H)
    return params


def _lstm_ref_dir(x, wih, whh, b, reverse, matmul_dtype):
    T, B, _ = x.shape
    H = whh.shape[0]

    def step(carry, x_t):
        h, c = carry
        gates = (jnp.dot(x_t.astype(matmul_dtype), wih.astype(matmul_dtype),
                         preferred_element_type=jnp.float32)
                 + jnp.dot(h.astype(matmul_dtype), whh.astype(matmul_dtype),
                           preferred_element_type=jnp.float32)
                 + b)
        i = jax.nn.sigmoid(gates[:, :H])
        f = jax.nn.sigmoid(gates[:, H:2 * H])
        g = jnp.tanh(gates[:, 2 * H:3 * H])
        o = jax.nn.sigmoid(gates[:, 3 * H:])
        c = f * c + i * g
        h = o * jnp.tanh(c)
        return (h, c), h

    xs = x[::-1] if reverse else x
    init = (jnp.zeros((B, H), jnp.float32), jnp.zeros((B, H), jnp.float32))
    _, hs = jax.lax.scan(step, init, xs)
    return hs[::-1] if reverse else hs


def bilstm_ref(x, params, matmul_dtype=jnp.float32):
    hf = _lstm_ref_dir(x, params["wih_f"], params["whh_f"], params["b_f"],
                       False, matmul_dtype)
    hb = _lstm_ref_dir(x, params["wih_b"], params["whh_b"], params["b_b"],
                       True, matmul_dtype)
    return jnp.concatenate([hf, hb], axis=-1)


if __name__ == "__main__":
    T, B, N_IN, N_HIDDEN = 8, 2, 16, 32

    root = jax.random.PRNGKey(0)
    k_x, k_p = jax.random.split(root)
    x = jax.random.normal(k_x, (T, B, N_IN), dtype=jnp.float32)
    params = init_params(k_p, N_IN, N_HIDDEN)

    out = jax.jit(bilstm_pallas)(x, params)
    out = jax.block_until_ready(out)
    assert out.shape == (T, B, 2 * N_HIDDEN), out.shape

    # Tight check vs a matched-precision (bf16 matmul inputs, f32 accumulate)
    # reference — catches any layout / indexing bug.
    ref_mixed = bilstm_ref(x, params, matmul_dtype=jnp.bfloat16)
    assert jnp.allclose(out, ref_mixed, atol=2e-3, rtol=2e-3), \
        "mismatch vs. matched-precision JAX reference"

    # Loose check vs the full-f32 (PyTorch-semantics) reference.
    ref_f32 = bilstm_ref(x, params, matmul_dtype=jnp.float32)
    assert jnp.allclose(out, ref_f32, atol=5e-2, rtol=5e-2), \
        "mismatch vs. f32 JAX reference"

    print("KERNEL_OK")
</pallas_src>

<mosaic_0001>
module attributes {stable_mosaic.version = 11 : i64} {
  func.func @_bilstm_kernel(%arg0: memref<16x16xbf16, #tpu.memory_space<vmem>>, %arg1: memref<16x16xbf16, #tpu.memory_space<vmem>>, %arg2: memref<16x128xbf16, #tpu.memory_space<vmem>>, %arg3: memref<16x128xbf16, #tpu.memory_space<vmem>>, %arg4: memref<64x256xbf16, #tpu.memory_space<vmem>>, %arg5: memref<1x256xf32, #tpu.memory_space<vmem>>, %arg6: memref<16x64xf32, #tpu.memory_space<vmem>>) attributes {dimension_semantics = [], scalar_prefetch = 0 : i64, scratch_operands = 0 : i64, tpu.core_type = #tpu.core_type<tc>} {
    %c0 = arith.constant 0 : index
    %c0_0 = arith.constant 0 : index
    %0 = vector.load %arg0[%c0, %c0_0] : memref<16x16xbf16, #tpu.memory_space<vmem>>, vector<16x16xbf16>
    %c0_1 = arith.constant 0 : index
    %c0_2 = arith.constant 0 : index
    %1 = vector.load %arg2[%c0_1, %c0_2] : memref<16x128xbf16, #tpu.memory_space<vmem>>, vector<16x128xbf16>
    %cst = arith.constant dense<0.000000e+00> : vector<16x128xf32>
    %2 = tpu.matmul %0, %1, %cst {dimension_numbers = #tpu.dot_dimension_numbers<[1], [0], [0], [1], [0, 0, 1, 1], [], []>} : vector<16x16xbf16>, vector<16x128xbf16>, vector<16x128xf32> -> vector<16x128xf32>
    %c0_3 = arith.constant 0 : index
    %c0_4 = arith.constant 0 : index
    %3 = vector.load %arg1[%c0_3, %c0_4] : memref<16x16xbf16, #tpu.memory_space<vmem>>, vector<16x16xbf16>
    %c0_5 = arith.constant 0 : index
    %c0_6 = arith.constant 0 : index
    %4 = vector.load %arg3[%c0_5, %c0_6] : memref<16x128xbf16, #tpu.memory_space<vmem>>, vector<16x128xbf16>
    %cst_7 = arith.constant dense<0.000000e+00> : vector<16x128xf32>
    %5 = tpu.matmul %3, %4, %cst_7 {dimension_numbers = #tpu.dot_dimension_numbers<[1], [0], [0], [1], [0, 0, 1, 1], [], []>} : vector<16x16xbf16>, vector<16x128xbf16>, vector<16x128xf32> -> vector<16x128xf32>
    %6 = vector.extract_strided_slice %2 {offsets = [0, 0], sizes = [16, 32], strides = [1, 1]} : vector<16x128xf32> to vector<16x32xf32>
    %7 = vector.extract_strided_slice %5 {offsets = [0, 0], sizes = [16, 32], strides = [1, 1]} : vector<16x128xf32> to vector<16x32xf32>
    %8 = vector.extract_strided_slice %2 {offsets = [0, 32], sizes = [16, 32], strides = [1, 1]} : vector<16x128xf32> to vector<16x32xf32>
    %9 = vector.extract_strided_slice %5 {offsets = [0, 32], sizes = [16, 32], strides = [1, 1]} : vector<16x128xf32> to vector<16x32xf32>
    %10 = vector.extract_strided_slice %2 {offsets = [0, 64], sizes = [16, 32], strides = [1, 1]} : vector<16x128xf32> to vector<16x32xf32>
    %11 = vector.extract_strided_slice %5 {offsets = [0, 64], sizes = [16, 32], strides = [1, 1]} : vector<16x128xf32> to vector<16x32xf32>
    %12 = vector.extract_strided_slice %2 {offsets = [0, 96], sizes = [16, 32], strides = [1, 1]} : vector<16x128xf32> to vector<16x32xf32>
    %13 = vector.extract_strided_slice %5 {offsets = [0, 96], sizes = [16, 32], strides = [1, 1]} : vector<16x128xf32> to vector<16x32xf32>
    %14 = tpu.concatenate %6, %7, %8, %9, %10, %11, %12, %13 in 1 : vector<16x32xf32>, vector<16x32xf32>, vector<16x32xf32>, vector<16x32xf32>, vector<16x32xf32>, vector<16x32xf32>, vector<16x32xf32>, vector<16x32xf32> -> vector<16x256xf32>
    %c0_8 = arith.constant 0 : index
    %c0_9 = arith.constant 0 : index
    %15 = vector.load %arg5[%c0_8, %c0_9] : memref<1x256xf32, #tpu.memory_space<vmem>>, vector<1x256xf32>
    %16 = vector.broadcast %15 : vector<1x256xf32> to vector<16x256xf32>
    %17 = arith.addf %14, %16 : vector<16x256xf32>
    %c0_10 = arith.constant 0 : index
    %c0_11 = arith.constant 0 : index
    %18 = vector.load %arg4[%c0_10, %c0_11] : memref<64x256xbf16, #tpu.memory_space<vmem>>, vector<64x256xbf16>
    %cst_12 = arith.constant 0.000000e+00 : f32
    %19 = vector.broadcast %cst_12 : f32 to vector<2x64xf32>
    %20 = vector.extract_strided_slice %17 {offsets = [0, 0], sizes = [2, 256], strides = [1, 1]} : vector<16x256xf32> to vector<2x256xf32>
    %21 = vector.extract_strided_slice %20 {offsets = [0, 0], sizes = [2, 192], strides = [1, 1]} : vector<2x256xf32> to vector<2x192xf32>
    %22 = arith.negf %21 : vector<2x192xf32>
    %23 = math.exp %22 : vector<2x192xf32>
    %cst_13 = arith.constant 1.000000e+00 : f32
    %24 = vector.broadcast %cst_13 : f32 to vector<2x192xf32>
    %25 = arith.addf %24, %23 : vector<2x192xf32>
    %26 = arith.divf %24, %25 : vector<2x192xf32>
    %27 = vector.extract_strided_slice %20 {offsets = [0, 192], sizes = [2, 64], strides = [1, 1]} : vector<2x256xf32> to vector<2x64xf32>
    %28 = math.tanh %27 : vector<2x64xf32>
    %29 = vector.extract_strided_slice %26 {offsets = [0, 0], sizes = [2, 64], strides = [1, 1]} : vector<2x192xf32> to vector<2x64xf32>
    %30 = vector.extract_strided_slice %26 {offsets = [0, 64], sizes = [2, 64], strides = [1, 1]} : vector<2x192xf32> to vector<2x64xf32>
    %31 = vector.extract_strided_slice %26 {offsets = [0, 128], sizes = [2, 64], strides = [1, 1]} : vector<2x192xf32> to vector<2x64xf32>
    %32 = arith.mulf %30, %19 : vector<2x64xf32>
    %33 = arith.mulf %29, %28 : vector<2x64xf32>
    %34 = arith.addf %32, %33 : vector<2x64xf32>
    %35 = math.tanh %34 : vector<2x64xf32>
    %36 = arith.mulf %31, %35 : vector<2x64xf32>
    %37 = vector.extract_strided_slice %36 {offsets = [0, 0], sizes = [2, 32], strides = [1, 1]} : vector<2x64xf32> to vector<2x32xf32>
    %c0_14 = arith.constant 0 : index
    %c0_15 = arith.constant 0 : index
    %38 = vector.load %arg6[%c0_14, %c0_15] : memref<16x64xf32, #tpu.memory_space<vmem>>, vector<2x32xf32>
    tpu.vector_store %arg6[%c0_14, %c0_15], %37 {strides = array<i32>} : memref<16x64xf32, #tpu.memory_space<vmem>>, vector<2x32xf32>,
    %39 = vector.extract_strided_slice %36 {offsets = [0, 32], sizes = [2, 32], strides = [1, 1]} : vector<2x64xf32> to vector<2x32xf32>
    %c14 = arith.constant 14 : index
    %c32 = arith.constant 32 : index
    %40 = vector.load %arg6[%c14, %c32] : memref<16x64xf32, #tpu.memory_space<vmem>>, vector<2x32xf32>
    tpu.vector_store %arg6[%c14, %c32], %39 {strides = array<i32>} : memref<16x64xf32, #tpu.memory_space<vmem>>, vector<2x32xf32>,
    %41 = vector.extract_strided_slice %17 {offsets = [2, 0], sizes = [2, 256], strides = [1, 1]} : vector<16x256xf32> to vector<2x256xf32>
    %42 = arith.truncf %36 : vector<2x64xf32> to vector<2x64xbf16>
    %cst_16 = arith.constant dense<0.000000e+00> : vector<2x256xf32>
    %43 = tpu.matmul %42, %18, %cst_16 {dimension_numbers = #tpu.dot_dimension_numbers<[1], [0], [0], [1], [0, 0, 1, 1], [], []>} : vector<2x64xbf16>, vector<64x256xbf16>, vector<2x256xf32> -> vector<2x256xf32>
    %44 = arith.addf %41, %43 : vector<2x256xf32>
    %45 = vector.extract_strided_slice %44 {offsets = [0, 0], sizes = [2, 192], strides = [1, 1]} : vector<2x256xf32> to vector<2x192xf32>
    %46 = arith.negf %45 : vector<2x192xf32>
    %47 = math.exp %46 : vector<2x192xf32>
    %cst_17 = arith.constant 1.000000e+00 : f32
    %48 = vector.broadcast %cst_17 : f32 to vector<2x192xf32>
    %49 = arith.addf %48, %47 : vector<2x192xf32>
    %50 = arith.divf %48, %49 : vector<2x192xf32>
    %51 = vector.extract_strided_slice %44 {offsets = [0, 192], sizes = [2, 64], strides = [1, 1]} : vector<2x256xf32> to vector<2x64xf32>
    %52 = math.tanh %51 : vector<2x64xf32>
    %53 = vector.extract_strided_slice %50 {offsets = [0, 0], sizes = [2, 64], strides = [1, 1]} : vector<2x192xf32> to vector<2x64xf32>
    %54 = vector.extract_strided_slice %50 {offsets = [0, 64], sizes = [2, 64], strides = [1, 1]} : vector<2x192xf32> to vector<2x64xf32>
    %55 = vector.extract_strided_slice %50 {offsets = [0, 128], sizes = [2, 64], strides = [1, 1]} : vector<2x192xf32> to vector<2x64xf32>
    %56 = arith.mulf %54, %34 : vector<2x64xf32>
    %57 = arith.mulf %53, %52 : vector<2x64xf32>
    %58 = arith.addf %56, %57 : vector<2x64xf32>
    %59 = math.tanh %58 : vector<2x64xf32>
    %60 = arith.mulf %55, %59 : vector<2x64xf32>
    %61 = vector.extract_strided_slice %60 {offsets = [0, 0], sizes = [2, 32], strides = [1, 1]} : vector<2x64xf32> to vector<2x32xf32>
    %c2 = arith.constant 2 : index
    %c0_18 = arith.constant 0 : index
    %62 = vector.load %arg6[%c2, %c0_18] : memref<16x64xf32, #tpu.memory_space<vmem>>, vector<2x32xf32>
    tpu.vector_store %arg6[%c2, %c0_18], %61 {strides = array<i32>} : memref<16x64xf32, #tpu.memory_space<vmem>>, vector<2x32xf32>,
    %63 = vector.extract_strided_slice %60 {offsets = [0, 32], sizes = [2, 32], strides = [1, 1]} : vector<2x64xf32> to vector<2x32xf32>
    %c12 = arith.constant 12 : index
    %c32_19 = arith.constant 32 : index
    %64 = vector.load %arg6[%c12, %c32_19] : memref<16x64xf32, #tpu.memory_space<vmem>>, vector<2x32xf32>
    tpu.vector_store %arg6[%c12, %c32_19], %63 {strides = array<i32>} : memref<16x64xf32, #tpu.memory_space<vmem>>, vector<2x32xf32>,
    %65 = vector.extract_strided_slice %17 {offsets = [4, 0], sizes = [2, 256], strides = [1, 1]} : vector<16x256xf32> to vector<2x256xf32>
    %66 = arith.truncf %60 : vector<2x64xf32> to vector<2x64xbf16>
    %cst_20 = arith.constant dense<0.000000e+00> : vector<2x256xf32>
    %67 = tpu.matmul %66, %18, %cst_20 {dimension_numbers = #tpu.dot_dimension_numbers<[1], [0], [0], [1], [0, 0, 1, 1], [], []>} : vector<2x64xbf16>, vector<64x256xbf16>, vector<2x256xf32> -> vector<2x256xf32>
    %68 = arith.addf %65, %67 : vector<2x256xf32>
    %69 = vector.extract_strided_slice %68 {offsets = [0, 0], sizes = [2, 192], strides = [1, 1]} : vector<2x256xf32> to vector<2x192xf32>
    %70 = arith.negf %69 : vector<2x192xf32>
    %71 = math.exp %70 : vector<2x192xf32>
    %cst_21 = arith.constant 1.000000e+00 : f32
    %72 = vector.broadcast %cst_21 : f32 to vector<2x192xf32>
    %73 = arith.addf %72, %71 : vector<2x192xf32>
    %74 = arith.divf %72, %73 : vector<2x192xf32>
    %75 = vector.extract_strided_slice %68 {offsets = [0, 192], sizes = [2, 64], strides = [1, 1]} : vector<2x256xf32> to vector<2x64xf32>
    %76 = math.tanh %75 : vector<2x64xf32>
    %77 = vector.extract_strided_slice %74 {offsets = [0, 0], sizes = [2, 64], strides = [1, 1]} : vector<2x192xf32> to vector<2x64xf32>
    %78 = vector.extract_strided_slice %74 {offsets = [0, 64], sizes = [2, 64], strides = [1, 1]} : vector<2x192xf32> to vector<2x64xf32>
    %79 = vector.extract_strided_slice %74 {offsets = [0, 128], sizes = [2, 64], strides = [1, 1]} : vector<2x192xf32> to vector<2x64xf32>
    %80 = arith.mulf %78, %58 : vector<2x64xf32>
    %81 = arith.mulf %77, %76 : vector<2x64xf32>
    %82 = arith.addf %80, %81 : vector<2x64xf32>
    %83 = math.tanh %82 : vector<2x64xf32>
    %84 = arith.mulf %79, %83 : vector<2x64xf32>
    %85 = vector.extract_strided_slice %84 {offsets = [0, 0], sizes = [2, 32], strides = [1, 1]} : vector<2x64xf32> to vector<2x32xf32>
    %c4 = arith.constant 4 : index
    %c0_22 = arith.constant 0 : index
    %86 = vector.load %arg6[%c4, %c0_22] : memref<16x64xf32, #tpu.memory_space<vmem>>, vector<2x32xf32>
    tpu.vector_store %arg6[%c4, %c0_22], %85 {strides = array<i32>} : memref<16x64xf32, #tpu.memory_space<vmem>>, vector<2x32xf32>,
    %87 = vector.extract_strided_slice %84 {offsets = [0, 32], sizes = [2, 32], strides = [1, 1]} : vector<2x64xf32> to vector<2x32xf32>
    %c10 = arith.constant 10 : index
    %c32_23 = arith.constant 32 : index
    %88 = vector.load %arg6[%c10, %c32_23] : memref<16x64xf32, #tpu.memory_space<vmem>>, vector<2x32xf32>
    tpu.vector_store %arg6[%c10, %c32_23], %87 {strides = array<i32>} : memref<16x64xf32, #tpu.memory_space<vmem>>, vector<2x32xf32>,
    %89 = vector.extract_strided_slice %17 {offsets = [6, 0], sizes = [2, 256], strides = [1, 1]} : vector<16x256xf32> to vector<2x256xf32>
    %90 = arith.truncf %84 : vector<2x64xf32> to vector<2x64xbf16>
    %cst_24 = arith.constant dense<0.000000e+00> : vector<2x256xf32>
    %91 = tpu.matmul %90, %18, %cst_24 {dimension_numbers = #tpu.dot_dimension_numbers<[1], [0], [0], [1], [0, 0, 1, 1], [], []>} : vector<2x64xbf16>, vector<64x256xbf16>, vector<2x256xf32> -> vector<2x256xf32>
    %92 = arith.addf %89, %91 : vector<2x256xf32>
    %93 = vector.extract_strided_slice %92 {offsets = [0, 0], sizes = [2, 192], strides = [1, 1]} : vector<2x256xf32> to vector<2x192xf32>
    %94 = arith.negf %93 : vector<2x192xf32>
    %95 = math.exp %94 : vector<2x192xf32>
    %cst_25 = arith.constant 1.000000e+00 : f32
    %96 = vector.broadcast %cst_25 : f32 to vector<2x192xf32>
    %97 = arith.addf %96, %95 : vector<2x192xf32>
    %98 = arith.divf %96, %97 : vector<2x192xf32>
    %99 = vector.extract_strided_slice %92 {offsets = [0, 192], sizes = [2, 64], strides = [1, 1]} : vector<2x256xf32> to vector<2x64xf32>
    %100 = math.tanh %99 : vector<2x64xf32>
    %101 = vector.extract_strided_slice %98 {offsets = [0, 0], sizes = [2, 64], strides = [1, 1]} : vector<2x192xf32> to vector<2x64xf32>
    %102 = vector.extract_strided_slice %98 {offsets = [0, 64], sizes = [2, 64], strides = [1, 1]} : vector<2x192xf32> to vector<2x64xf32>
    %103 = vector.extract_strided_slice %98 {offsets = [0, 128], sizes = [2, 64], strides = [1, 1]} : vector<2x192xf32> to vector<2x64xf32>
    %104 = arith.mulf %102, %82 : vector<2x64xf32>
    %105 = arith.mulf %101, %100 : vector<2x64xf32>
    %106 = arith.addf %104, %105 : vector<2x64xf32>
    %107 = math.tanh %106 : vector<2x64xf32>
    %108 = arith.mulf %103, %107 : vector<2x64xf32>
    %109 = vector.extract_strided_slice %108 {offsets = [0, 0], sizes = [2, 32], strides = [1, 1]} : vector<2x64xf32> to vector<2x32xf32>
    %c6 = arith.constant 6 : index
    %c0_26 = arith.constant 0 : index
    %110 = vector.load %arg6[%c6, %c0_26] : memref<16x64xf32, #tpu.memory_space<vmem>>, vector<2x32xf32>
    tpu.vector_store %arg6[%c6, %c0_26], %109 {strides = array<i32>} : memref<16x64xf32, #tpu.memory_space<vmem>>, vector<2x32xf32>,
    %111 = vector.extract_strided_slice %108 {offsets = [0, 32], sizes = [2, 32], strides = [1, 1]} : vector<2x64xf32> to vector<2x32xf32>
    %c8 = arith.constant 8 : index
    %c32_27 = arith.constant 32 : index
    %112 = vector.load %arg6[%c8, %c32_27] : memref<16x64xf32, #tpu.memory_space<vmem>>, vector<2x32xf32>
    tpu.vector_store %arg6[%c8, %c32_27], %111 {strides = array<i32>} : memref<16x64xf32, #tpu.memory_space<vmem>>, vector<2x32xf32>,
    %113 = vector.extract_strided_slice %17 {offsets = [8, 0], sizes = [2, 256], strides = [1, 1]} : vector<16x256xf32> to vector<2x256xf32>
    %114 = arith.truncf %108 : vector<2x64xf32> to vector<2x64xbf16>
    %cst_28 = arith.constant dense<0.000000e+00> : vector<2x256xf32>
    %115 = tpu.matmul %114, %18, %cst_28 {dimension_numbers = #tpu.dot_dimension_numbers<[1], [0], [0], [1], [0, 0, 1, 1], [], []>} : vector<2x64xbf16>, vector<64x256xbf16>, vector<2x256xf32> -> vector<2x256xf32>
    %116 = arith.addf %113, %115 : vector<2x256xf32>
    %117 = vector.extract_strided_slice %116 {offsets = [0, 0], sizes = [2, 192], strides = [1, 1]} : vector<2x256xf32> to vector<2x192xf32>
    %118 = arith.negf %117 : vector<2x192xf32>
    %119 = math.exp %118 : vector<2x192xf32>
    %cst_29 = arith.constant 1.000000e+00 : f32
    %120 = vector.broadcast %cst_29 : f32 to vector<2x192xf32>
    %121 = arith.addf %120, %119 : vector<2x192xf32>
    %122 = arith.divf %120, %121 : vector<2x192xf32>
    %123 = vector.extract_strided_slice %116 {offsets = [0, 192], sizes = [2, 64], strides = [1, 1]} : vector<2x256xf32> to vector<2x64xf32>
    %124 = math.tanh %123 : vector<2x64xf32>
    %125 = vector.extract_strided_slice %122 {offsets = [0, 0], sizes = [2, 64], strides = [1, 1]} : vector<2x192xf32> to vector<2x64xf32>
    %126 = vector.extract_strided_slice %122 {offsets = [0, 64], sizes = [2, 64], strides = [1, 1]} : vector<2x192xf32> to vector<2x64xf32>
    %127 = vector.extract_strided_slice %122 {offsets = [0, 128], sizes = [2, 64], strides = [1, 1]} : vector<2x192xf32> to vector<2x64xf32>
    %128 = arith.mulf %126, %106 : vector<2x64xf32>
    %129 = arith.mulf %125, %124 : vector<2x64xf32>
    %130 = arith.addf %128, %129 : vector<2x64xf32>
    %131 = math.tanh %130 : vector<2x64xf32>
    %132 = arith.mulf %127, %131 : vector<2x64xf32>
    %133 = vector.extract_strided_slice %132 {offsets = [0, 0], sizes = [2, 32], strides = [1, 1]} : vector<2x64xf32> to vector<2x32xf32>
    %c8_30 = arith.constant 8 : index
    %c0_31 = arith.constant 0 : index
    %134 = vector.load %arg6[%c8_30, %c0_31] : memref<16x64xf32, #tpu.memory_space<vmem>>, vector<2x32xf32>
    tpu.vector_store %arg6[%c8_30, %c0_31], %133 {strides = array<i32>} : memref<16x64xf32, #tpu.memory_space<vmem>>, vector<2x32xf32>,
    %135 = vector.extract_strided_slice %132 {offsets = [0, 32], sizes = [2, 32], strides = [1, 1]} : vector<2x64xf32> to vector<2x32xf32>
    %c6_32 = arith.constant 6 : index
    %c32_33 = arith.constant 32 : index
    %136 = vector.load %arg6[%c6_32, %c32_33] : memref<16x64xf32, #tpu.memory_space<vmem>>, vector<2x32xf32>
    tpu.vector_store %arg6[%c6_32, %c32_33], %135 {strides = array<i32>} : memref<16x64xf32, #tpu.memory_space<vmem>>, vector<2x32xf32>,
    %137 = vector.extract_strided_slice %17 {offsets = [10, 0], sizes = [2, 256], strides = [1, 1]} : vector<16x256xf32> to vector<2x256xf32>
    %138 = arith.truncf %132 : vector<2x64xf32> to vector<2x64xbf16>
    %cst_34 = arith.constant dense<0.000000e+00> : vector<2x256xf32>
    %139 = tpu.matmul %138, %18, %cst_34 {dimension_numbers = #tpu.dot_dimension_numbers<[1], [0], [0], [1], [0, 0, 1, 1], [], []>} : vector<2x64xbf16>, vector<64x256xbf16>, vector<2x256xf32> -> vector<2x256xf32>
    %140 = arith.addf %137, %139 : vector<2x256xf32>
    %141 = vector.extract_strided_slice %140 {offsets = [0, 0], sizes = [2, 192], strides = [1, 1]} : vector<2x256xf32> to vector<2x192xf32>
    %142 = arith.negf %141 : vector<2x192xf32>
    %143 = math.exp %142 : vector<2x192xf32>
    %cst_35 = arith.constant 1.000000e+00 : f32
    %144 = vector.broadcast %cst_35 : f32 to vector<2x192xf32>
    %145 = arith.addf %144, %143 : vector<2x192xf32>
    %146 = arith.divf %144, %145 : vector<2x192xf32>
    %147 = vector.extract_strided_slice %140 {offsets = [0, 192], sizes = [2, 64], strides = [1, 1]} : vector<2x256xf32> to vector<2x64xf32>
    %148 = math.tanh %147 : vector<2x64xf32>
    %149 = vector.extract_strided_slice %146 {offsets = [0, 0], sizes = [2, 64], strides = [1, 1]} : vector<2x192xf32> to vector<2x64xf32>
    %150 = vector.extract_strided_slice %146 {offsets = [0, 64], sizes = [2, 64], strides = [1, 1]} : vector<2x192xf32> to vector<2x64xf32>
    %151 = vector.extract_strided_slice %146 {offsets = [0, 128], sizes = [2, 64], strides = [1, 1]} : vector<2x192xf32> to vector<2x64xf32>
    %152 = arith.mulf %150, %130 : vector<2x64xf32>
    %153 = arith.mulf %149, %148 : vector<2x64xf32>
    %154 = arith.addf %152, %153 : vector<2x64xf32>
    %155 = math.tanh %154 : vector<2x64xf32>
    %156 = arith.mulf %151, %155 : vector<2x64xf32>
    %157 = vector.extract_strided_slice %156 {offsets = [0, 0], sizes = [2, 32], strides = [1, 1]} : vector<2x64xf32> to vector<2x32xf32>
    %c10_36 = arith.constant 10 : index
    %c0_37 = arith.constant 0 : index
    %158 = vector.load %arg6[%c10_36, %c0_37] : memref<16x64xf32, #tpu.memory_space<vmem>>, vector<2x32xf32>
    tpu.vector_store %arg6[%c10_36, %c0_37], %157 {strides = array<i32>} : memref<16x64xf32, #tpu.memory_space<vmem>>, vector<2x32xf32>,
    %159 = vector.extract_strided_slice %156 {offsets = [0, 32], sizes = [2, 32], strides = [1, 1]} : vector<2x64xf32> to vector<2x32xf32>
    %c4_38 = arith.constant 4 : index
    %c32_39 = arith.constant 32 : index
    %160 = vector.load %arg6[%c4_38, %c32_39] : memref<16x64xf32, #tpu.memory_space<vmem>>, vector<2x32xf32>
    tpu.vector_store %arg6[%c4_38, %c32_39], %159 {strides = array<i32>} : memref<16x64xf32, #tpu.memory_space<vmem>>, vector<2x32xf32>,
    %161 = vector.extract_strided_slice %17 {offsets = [12, 0], sizes = [2, 256], strides = [1, 1]} : vector<16x256xf32> to vector<2x256xf32>
    %162 = arith.truncf %156 : vector<2x64xf32> to vector<2x64xbf16>
    %cst_40 = arith.constant dense<0.000000e+00> : vector<2x256xf32>
    %163 = tpu.matmul %162, %18, %cst_40 {dimension_numbers = #tpu.dot_dimension_numbers<[1], [0], [0], [1], [0, 0, 1, 1], [], []>} : vector<2x64xbf16>, vector<64x256xbf16>, vector<2x256xf32> -> vector<2x256xf32>
    %164 = arith.addf %161, %163 : vector<2x256xf32>
    %165 = vector.extract_strided_slice %164 {offsets = [0, 0], sizes = [2, 192], strides = [1, 1]} : vector<2x256xf32> to vector<2x192xf32>
    %166 = arith.negf %165 : vector<2x192xf32>
    %167 = math.exp %166 : vector<2x192xf32>
    %cst_41 = arith.constant 1.000000e+00 : f32
    %168 = vector.broadcast %cst_41 : f32 to vector<2x192xf32>
    %169 = arith.addf %168, %167 : vector<2x192xf32>
    %170 = arith.divf %168, %169 : vector<2x192xf32>
    %171 = vector.extract_strided_slice %164 {offsets = [0, 192], sizes = [2, 64], strides = [1, 1]} : vector<2x256xf32> to vector<2x64xf32>
    %172 = math.tanh %171 : vector<2x64xf32>
    %173 = vector.extract_strided_slice %170 {offsets = [0, 0], sizes = [2, 64], strides = [1, 1]} : vector<2x192xf32> to vector<2x64xf32>
    %174 = vector.extract_strided_slice %170 {offsets = [0, 64], sizes = [2, 64], strides = [1, 1]} : vector<2x192xf32> to vector<2x64xf32>
    %175 = vector.extract_strided_slice %170 {offsets = [0, 128], sizes = [2, 64], strides = [1, 1]} : vector<2x192xf32> to vector<2x64xf32>
    %176 = arith.mulf %174, %154 : vector<2x64xf32>
    %177 = arith.mulf %173, %172 : vector<2x64xf32>
    %178 = arith.addf %176, %177 : vector<2x64xf32>
    %179 = math.tanh %178 : vector<2x64xf32>
    %180 = arith.mulf %175, %179 : vector<2x64xf32>
    %181 = vector.extract_strided_slice %180 {offsets = [0, 0], sizes = [2, 32], strides = [1, 1]} : vector<2x64xf32> to vector<2x32xf32>
    %c12_42 = arith.constant 12 : index
    %c0_43 = arith.constant 0 : index
    %182 = vector.load %arg6[%c12_42, %c0_43] : memref<16x64xf32, #tpu.memory_space<vmem>>, vector<2x32xf32>
    tpu.vector_store %arg6[%c12_42, %c0_43], %181 {strides = array<i32>} : memref<16x64xf32, #tpu.memory_space<vmem>>, vector<2x32xf32>,
    %183 = vector.extract_strided_slice %180 {offsets = [0, 32], sizes = [2, 32], strides = [1, 1]} : vector<2x64xf32> to vector<2x32xf32>
    %c2_44 = arith.constant 2 : index
    %c32_45 = arith.constant 32 : index
    %184 = vector.load %arg6[%c2_44, %c32_45] : memref<16x64xf32, #tpu.memory_space<vmem>>, vector<2x32xf32>
    tpu.vector_store %arg6[%c2_44, %c32_45], %183 {strides = array<i32>} : memref<16x64xf32, #tpu.memory_space<vmem>>, vector<2x32xf32>,
    %185 = vector.extract_strided_slice %17 {offsets = [14, 0], sizes = [2, 256], strides = [1, 1]} : vector<16x256xf32> to vector<2x256xf32>
    %186 = arith.truncf %180 : vector<2x64xf32> to vector<2x64xbf16>
    %cst_46 = arith.constant dense<0.000000e+00> : vector<2x256xf32>
    %187 = tpu.matmul %186, %18, %cst_46 {dimension_numbers = #tpu.dot_dimension_numbers<[1], [0], [0], [1], [0, 0, 1, 1], [], []>} : vector<2x64xbf16>, vector<64x256xbf16>, vector<2x256xf32> -> vector<2x256xf32>
    %188 = arith.addf %185, %187 : vector<2x256xf32>
    %189 = vector.extract_strided_slice %188 {offsets = [0, 0], sizes = [2, 192], strides = [1, 1]} : vector<2x256xf32> to vector<2x192xf32>
    %190 = arith.negf %189 : vector<2x192xf32>
    %191 = math.exp %190 : vector<2x192xf32>
    %cst_47 = arith.constant 1.000000e+00 : f32
    %192 = vector.broadcast %cst_47 : f32 to vector<2x192xf32>
    %193 = arith.addf %192, %191 : vector<2x192xf32>
    %194 = arith.divf %192, %193 : vector<2x192xf32>
    %195 = vector.extract_strided_slice %188 {offsets = [0, 192], sizes = [2, 64], strides = [1, 1]} : vector<2x256xf32> to vector<2x64xf32>
    %196 = math.tanh %195 : vector<2x64xf32>
    %197 = vector.extract_strided_slice %194 {offsets = [0, 0], sizes = [2, 64], strides = [1, 1]} : vector<2x192xf32> to vector<2x64xf32>
    %198 = vector.extract_strided_slice %194 {offsets = [0, 64], sizes = [2, 64], strides = [1, 1]} : vector<2x192xf32> to vector<2x64xf32>
    %199 = vector.extract_strided_slice %194 {offsets = [0, 128], sizes = [2, 64], strides = [1, 1]} : vector<2x192xf32> to vector<2x64xf32>
    %200 = arith.mulf %198, %178 : vector<2x64xf32>
    %201 = arith.mulf %197, %196 : vector<2x64xf32>
    %202 = arith.addf %200, %201 : vector<2x64xf32>
    %203 = math.tanh %202 : vector<2x64xf32>
    %204 = arith.mulf %199, %203 : vector<2x64xf32>
    %205 = vector.extract_strided_slice %204 {offsets = [0, 0], sizes = [2, 32], strides = [1, 1]} : vector<2x64xf32> to vector<2x32xf32>
    %c14_48 = arith.constant 14 : index
    %c0_49 = arith.constant 0 : index
    %206 = vector.load %arg6[%c14_48, %c0_49] : memref<16x64xf32, #tpu.memory_space<vmem>>, vector<2x32xf32>
    tpu.vector_store %arg6[%c14_48, %c0_49], %205 {strides = array<i32>} : memref<16x64xf32, #tpu.memory_space<vmem>>, vector<2x32xf32>,
    %207 = vector.extract_strided_slice %204 {offsets = [0, 32], sizes = [2, 32], strides = [1, 1]} : vector<2x64xf32> to vector<2x32xf32>
    %c0_50 = arith.constant 0 : index
    %c32_51 = arith.constant 32 : index
    %208 = vector.load %arg6[%c0_50, %c32_51] : memref<16x64xf32, #tpu.memory_space<vmem>>, vector<2x32xf32>
    tpu.vector_store %arg6[%c0_50, %c32_51], %207 {strides = array<i32>} : memref<16x64xf32, #tpu.memory_space<vmem>>, vector<2x32xf32>,
    return
  }
}

</mosaic_0001>

<llo_original>
// kernel: bilstm_pallas.1
$region0: #{bilstm_pallas.1}
  #allocation0 [shape = 'u32[]', space=smem, size = 0x4, offset = 0x4, fixed_abs, tag = 'smem constant byte address 0x4 - core index']
  #allocation1 [shape = 'u32[144,128]{1,0:T(1,128)}', space=vmem, size = 0x12000, scoped, tag = 'internal scratch']
  %s0 = inlined_call_operand.vmem [shape: bf16[16,16], index: 0, kind: input, shape index: {}]
  %s1 = inlined_call_operand.vmem [shape: bf16[16,16], index: 1, kind: input, shape index: {}]
  %s2 = inlined_call_operand.vmem [shape: bf16[16,128], index: 2, kind: input, shape index: {}]
  %s3 = inlined_call_operand.vmem [shape: bf16[16,128], index: 3, kind: input, shape index: {}]
  %s4 = inlined_call_operand.vmem [shape: bf16[64,256], index: 4, kind: input, shape index: {}]
  %s5 = inlined_call_operand.vmem [shape: f32[1,256], index: 5, kind: input, shape index: {}]
  %s6 = inlined_call_operand.hbm [shape: f32[16,64], index: 6, kind: output, shape index: {}]
  %s7 = sld [smem:[#allocation0]]
  $region34: #{bilstm_pallas.1} parent=0
    _
  %s9 = ssub.s32 1, %s7
  %s10 = scalar_select 0, %s9, %s7
  $region1: #{bilstm_pallas.1} parent=0
    #allocation2 [shape = 'u8[8192]{0}', space=vmem, size = 0x2000, scoped, tag = 'output window, operand 0, single buffered']
    #allocation3 [shape = 's32[1]{0}', space=sflag, size = 0x4, scoped, tag = 'scoped memory for bilstm_pallas.1']
    %11 = vsyncpa [#allocation3], 0
    // Predicated region
    $region2: #{bilstm_pallas.1} parent=1 // pred_check
      _
    $region3: #{bilstm_pallas.1} parent=1 // pred_check_branch
      %13 = sbr.rel (0) target = $region5
    $region4: #{bilstm_pallas.1} parent=1 // pred_region
      _
    $region5: #{bilstm_pallas.1} parent=1 // pred_fallthru
      _
    // Predicated region
    $region6: #{bilstm_pallas.1} parent=1 // pred_check
      _
    $region7: #{bilstm_pallas.1} parent=1 // pred_check_branch
      %15 = sbr.rel (0) target = $region9
    $region8: #{bilstm_pallas.1} parent=1 // pred_region
      _
    $region9: #{bilstm_pallas.1} parent=1 // pred_fallthru
      _
    // Predicated region
    $region10: #{bilstm_pallas.1} parent=1 // pred_check
      _
    $region11: #{bilstm_pallas.1} parent=1 // pred_check_branch
      %17 = sbr.rel (0) target = $region13
    $region12: #{bilstm_pallas.1} parent=1 // pred_region
      _
    $region13: #{bilstm_pallas.1} parent=1 // pred_fallthru
      _
    // Predicated region
    $region14: #{bilstm_pallas.1} parent=1 // pred_check
      _
    $region15: #{bilstm_pallas.1} parent=1 // pred_check_branch
      %19 = sbr.rel (0) target = $region17
    $region16: #{bilstm_pallas.1} parent=1 // pred_region
      _
    $region17: #{bilstm_pallas.1} parent=1 // pred_fallthru
      _
    // Predicated region
    $region18: #{bilstm_pallas.1} parent=1 // pred_check
      _
    $region19: #{bilstm_pallas.1} parent=1 // pred_check_branch
      %21 = sbr.rel (0) target = $region21
    $region20: #{bilstm_pallas.1} parent=1 // pred_region
      _
    $region21: #{bilstm_pallas.1} parent=1 // pred_fallthru
      _
    // Predicated region
    $region22: #{bilstm_pallas.1} parent=1 // pred_check
      _
    $region23: #{bilstm_pallas.1} parent=1 // pred_check_branch
      %23 = sbr.rel (0) target = $region25
    $region24: #{bilstm_pallas.1} parent=1 // pred_region
      _
    $region25: #{bilstm_pallas.1} parent=1 // pred_fallthru
      _
    %v25 = vld [vmem:[%s0] sm:$0xf]
    %v26 = vld [vmem:[%s0 + $0x4] sm:$0xf]
    %v27 = vld [vmem:[%s2] sm:$0xf]
    %v28 = vld [vmem:[%s2 + $0x4] sm:$0xf]
    %v31 = vunpack.c.l.b16 %v25
    %v32 = vunpack.c.l.b16 %v26
    %v33 = vpack.c.b16 %v32, %v31
    %v36 = vunpack.c.l.b16 %v27
    %v37 = vunpack.c.l.b16 %v28
    %v38 = vpack.c.b16 %v37, %v36
    %vm40 = vcmask 130048
    %v42 = vsel %vm40, %v33, 0
    %44 = vmatprep.subr.bf16.mxu0 0
    %45 = vmatpush1.bf16.msra.mxu0 0
    %46 = vmatprep.subr.bf16.mxu0 0
    %47 = vmatpush1.bf16.msra.mxu0 0
    %48 = vmatprep.subr.bf16.mxu0 0
    %49 = vmatpush1.bf16.msra.mxu0 0
    %50 = vmatprep.subr.bf16.mxu0 0
    %51 = vmatpush1.bf16.msra.mxu0 0
    %52 = vmatprep.subr.bf16.mxu0 0
    %53 = vmatpush1.bf16.msra.mxu0 0
    %54 = vmatprep.subr.bf16.mxu0 0
    %55 = vmatpush1.bf16.msra.mxu0 0
    %56 = vmatprep.subr.bf16.mxu0 0
    %57 = vmatpush1.bf16.msra.mxu0 0
    %58 = vmatprep.subr.bf16.mxu0 0
    %59 = vmatpush1.bf16.msra.mxu0 %v38
    %60 = vmatprep.subr.bf16.mxu0 0
    %61 = vmatpush2.bf16.msra.mxu0 0
    %62 = vmatprep.subr.bf16.mxu0 0
    %63 = vmatpush2.bf16.msra.mxu0 0
    %64 = vmatprep.subr.bf16.mxu0 0
    %65 = vmatpush2.bf16.msra.mxu0 0
    %66 = vmatprep.subr.bf16.mxu0 0
    %67 = vmatpush2.bf16.msra.mxu0 0
    %68 = vmatprep.subr.bf16.mxu0 0
    %69 = vmatpush2.bf16.msra.mxu0 0
    %70 = vmatprep.subr.bf16.mxu0 0
    %71 = vmatpush2.bf16.msra.mxu0 0
    %72 = vmatprep.subr.bf16.mxu0 0
    %73 = vmatpush2.bf16.msra.mxu0 0
    %74 = vmatprep.subr.bf16.mxu0 0
    %75 = vmatpush2.bf16.msra.mxu0 0
    %76 = vmatprep.mubr.bf16.mxu0 0
    %77 = vmatmul.mubr.bf16.gmra.mxu0 %v42
    %v78 = vpop.f32.mrf.mxu0
    %v79 = vadd.f32 0.0, %v78
    %v80 = vpop.f32.mrf.mxu0
    %v81 = vpop.f32.mrf.mxu0
    %v82 = vadd.f32 0.0, %v81
    %v83 = vpop.f32.mrf.mxu0
    %84 = vdwg.mxu0
    %v85 = vld [vmem:[%s1] sm:$0xf]
    %v86 = vld [vmem:[%s1 + $0x4] sm:$0xf]
    %v87 = vld [vmem:[%s3] sm:$0xf]
    %v88 = vld [vmem:[%s3 + $0x4] sm:$0xf]
    %v91 = vunpack.c.l.b16 %v85
    %v92 = vunpack.c.l.b16 %v86
    %v93 = vpack.c.b16 %v92, %v91
    %v96 = vunpack.c.l.b16 %v87
    %v97 = vunpack.c.l.b16 %v88
    %v98 = vpack.c.b16 %v97, %v96
    %v101 = vsel %vm40, %v93, 0
    %103 = vmatprep.subr.bf16.mxu0 0
    %104 = vmatpush1.bf16.msra.mxu0 0
    %105 = vmatprep.subr.bf16.mxu0 0
    %106 = vmatpush1.bf16.msra.mxu0 0
    %107 = vmatprep.subr.bf16.mxu0 0
    %108 = vmatpush1.bf16.msra.mxu0 0
    %109 = vmatprep.subr.bf16.mxu0 0
    %110 = vmatpush1.bf16.msra.mxu0 0
    %111 = vmatprep.subr.bf16.mxu0 0
    %112 = vmatpush1.bf16.msra.mxu0 0
    %113 = vmatprep.subr.bf16.mxu0 0
    %114 = vmatpush1.bf16.msra.mxu0 0
    %115 = vmatprep.subr.bf16.mxu0 0
    %116 = vmatpush1.bf16.msra.mxu0 0
    %117 = vmatprep.subr.bf16.mxu0 0
    %118 = vmatpush1.bf16.msra.mxu0 %v98
    %119 = vmatprep.subr.bf16.mxu0 0
    %120 = vmatpush2.bf16.msra.mxu0 0
    %121 = vmatprep.subr.bf16.mxu0 0
    %122 = vmatpush2.bf16.msra.mxu0 0
    %123 = vmatprep.subr.bf16.mxu0 0
    %124 = vmatpush2.bf16.msra.mxu0 0
    %125 = vmatprep.subr.bf16.mxu0 0
    %126 = vmatpush2.bf16.msra.mxu0 0
    %127 = vmatprep.subr.bf16.mxu0 0
    %128 = vmatpush2.bf16.msra.mxu0 0
    %129 = vmatprep.subr.bf16.mxu0 0
    %130 = vmatpush2.bf16.msra.mxu0 0
    %131 = vmatprep.subr.bf16.mxu0 0
    %132 = vmatpush2.bf16.msra.mxu0 0
    %133 = vmatprep.subr.bf16.mxu0 0
    %134 = vmatpush2.bf16.msra.mxu0 0
    %135 = vmatprep.mubr.bf16.mxu0 0
    %136 = vmatmul.mubr.bf16.gmra.mxu0 %v101
    %v137 = vpop.f32.mrf.mxu0
    %v138 = vadd.f32 0.0, %v137
    %v139 = vpop.f32.mrf.mxu0
    %v140 = vpop.f32.mrf.mxu0
    %v141 = vadd.f32 0.0, %v140
    %v142 = vpop.f32.mrf.mxu0
    %143 = vdwg.mxu0
    %146 = vrot.lane.b32.xlu0 %v138, 32
    %v147 = vpop.permute.xlu0 %146
    %148 = vrot.lane.b32.xlu0 %v141, 32
    %v149 = vpop.permute.xlu0 %148
    %154 = vrot.lane.b32.xlu0 %v79, 32
    %v155 = vpop.permute.xlu0 %154
    %156 = vrot.lane.b32.xlu0 %v82, 32
    %v157 = vpop.permute.xlu0 %156
    %160 = vrot.lane.b32.xlu0 %v138, 64
    %v161 = vpop.permute.xlu0 %160
    %162 = vrot.lane.b32.xlu0 %v141, 64
    %v163 = vpop.permute.xlu0 %162
    %166 = vrot.lane.b32.xlu0 %v79, 64
    %v167 = vpop.permute.xlu0 %166
    %168 = vrot.lane.b32.xlu0 %v82, 64
    %v169 = vpop.permute.xlu0 %168
    %172 = vrot.lane.b32.xlu0 %v138, 96
    %v173 = vpop.permute.xlu0 %172
    %174 = vrot.lane.b32.xlu0 %v141, 96
    %v175 = vpop.permute.xlu0 %174
    %178 = vrot.lane.b32.xlu0 %v79, 96
    %v179 = vpop.permute.xlu0 %178
    %180 = vrot.lane.b32.xlu0 %v82, 96
    %v181 = vpop.permute.xlu0 %180
    %vm184 = vcmask 261120
    %v185 = vsel %vm184, %v79, %v147
    %v186 = vsel %vm184, %v82, %v149
    %vm187 = vcmask 523264
    %v188 = vsel %vm187, %v185, %v155
    %v189 = vsel %vm187, %v186, %v157
    %vm190 = vcmask 785408
    %v191 = vsel %vm190, %v188, %v161
    %v192 = vsel %vm190, %v189, %v163
    %v193 = vsel %vm184, %v167, %v173
    %v194 = vsel %vm184, %v169, %v175
    %v195 = vsel %vm187, %v193, %v179
    %v196 = vsel %vm187, %v194, %v181
    %v197 = vsel %vm190, %v195, %v138
    %v198 = vsel %vm190, %v196, %v141
    %v199 = vld [vmem:[%s5] sm:$0x3]
    %v201 = vlaneseq
    %v202 = vshrl.u32 %v201, 7
    %v203 = vsub.s32 0, %v202
    %v204 = vrot.slane %v199, %v203
    %v205 = vlaneseq
    %v206 = vshrl.u32 %v205, 7
    %v207 = vsub.s32 1, %v206
    %v208 = vrot.slane %v199, %v207
    %v211 = vadd.f32 %v191, %v204
    %v212 = vadd.f32 %v197, %v208
    %v213 = vadd.f32 %v192, %v204
    %v214 = vadd.f32 %v198, %v208
    %v215 = vld [vmem:[%s4] sm:$0xff]
    %v216 = vld [vmem:[%s4 + $0x8] sm:$0xff]
    %v217 = vld [vmem:[%s4 + $0x10] sm:$0xff]
    %v218 = vld [vmem:[%s4 + $0x18] sm:$0xff]
    %v219 = vld [vmem:[%s4 + $0x20] sm:$0xff]
    %v220 = vld [vmem:[%s4 + $0x28] sm:$0xff]
    %v221 = vld [vmem:[%s4 + $0x30] sm:$0xff]
    %v222 = vld [vmem:[%s4 + $0x38] sm:$0xff]
    %v223 = vxor.u32 %v211, 2147483648
    %v224 = vxor.u32 %v212, 2147483648
    %v225 = vmul.f32 %v223, 1.442695
    %v226 = vpow.pop %v225
    %v227 = vmul.f32 %v224, 1.442695
    %v228 = vpow.pop %v227
    %v229 = vadd.f32 %v226, 1.0
    %v230 = vadd.f32 %v228, 1.0
    %v231 = vrcp.pop %v229
    %v232 = vmul.f32 1.0, %v231
    %v233 = vrcp.pop %v230
    %v234 = vmul.f32 1.0, %v233
    %v235 = vtanh.pop %v212
    %v236 = vmul.f32 %v232, 0.0
    %238 = vrot.lane.b32.xlu0 %v235, 64
    %v239 = vpop.permute.xlu0 %238
    %v241 = vmul.f32 %v232, %v239
    %243 = vrot.lane.b32.xlu0 %v241, 64
    %v244 = vpop.permute.xlu0 %243
    %v246 = vadd.f32 %v236, %v244
    %v247 = vtanh.pop %v246
    %249 = vrot.lane.b32.xlu0 %v247, 64
    %v250 = vpop.permute.xlu0 %249
    %v252 = vmul.f32 %v234, %v250
    %vm253 = vcmask 254976
    %254 = vst.msk [vmem:[#allocation2] sm:$0x3] %vm253, %v252
    %vm255 = vcmask 517376
    %256 = vst.msk [vmem:[#allocation2 + $0xe] sm:$0x3] %vm255, %v252
    %v257 = vpack.c.bf16 %v252, %v252
    %v266 = vunpack.c.l.b16 %v215
    %v267 = vunpack.c.h.b16 %v215
    %v268 = vunpack.c.l.b16 %v216
    %v269 = vunpack.c.h.b16 %v216
    %v270 = vunpack.c.l.b16 %v217
    %v271 = vunpack.c.h.b16 %v217
    %v272 = vunpack.c.l.b16 %v218
    %v273 = vunpack.c.h.b16 %v218
    %v274 = vunpack.c.l.b16 %v219
    %v275 = vunpack.c.h.b16 %v219
    %v276 = vunpack.c.l.b16 %v220
    %v277 = vunpack.c.h.b16 %v220
    %v278 = vunpack.c.l.b16 %v221
    %v279 = vunpack.c.h.b16 %v221
    %v280 = vunpack.c.l.b16 %v222
    %v281 = vunpack.c.h.b16 %v222
    %v282 = vpack.c.b16 %v268, %v266
    %v283 = vpack.c.b16 %v269, %v267
    %v284 = vpack.c.b16 %v272, %v270
    %v285 = vpack.c.b16 %v273, %v271
    %v286 = vpack.c.b16 %v276, %v274
    %v287 = vpack.c.b16 %v277, %v275
    %v288 = vpack.c.b16 %v280, %v278
    %v289 = vpack.c.b16 %v281, %v279
    %v299 = vsel %vm187, %v257, 0
    %301 = vmatprep.subr.bf16.mxu0 0
    %302 = vmatpush1.bf16.msra.mxu0 0
    %303 = vmatprep.subr.bf16.mxu0 0
    %304 = vmatpush1.bf16.msra.mxu0 0
    %305 = vmatprep.subr.bf16.mxu0 0
    %306 = vmatpush1.bf16.msra.mxu0 0
    %307 = vmatprep.subr.bf16.mxu0 0
    %308 = vmatpush1.bf16.msra.mxu0 0
    %309 = vmatprep.subr.bf16.mxu0 %v289
    %310 = vmatpush1.bf16.msra.mxu0 %v288
    %311 = vmatprep.subr.bf16.mxu0 %v287
    %312 = vmatpush1.bf16.msra.mxu0 %v286
    %313 = vmatprep.subr.bf16.mxu0 %v285
    %314 = vmatpush1.bf16.msra.mxu0 %v284
    %315 = vmatprep.subr.bf16.mxu0 %v283
    %316 = vmatpush1.bf16.msra.mxu0 %v282
    %317 = vmatprep.subr.bf16.mxu0 0
    %318 = vmatpush2.bf16.msra.mxu0 0
    %319 = vmatprep.subr.bf16.mxu0 0
    %320 = vmatpush2.bf16.msra.mxu0 0
    %321 = vmatprep.subr.bf16.mxu0 0
    %322 = vmatpush2.bf16.msra.mxu0 0
    %323 = vmatprep.subr.bf16.mxu0 0
    %324 = vmatpush2.bf16.msra.mxu0 0
    %325 = vmatprep.subr.bf16.mxu0 0
    %326 = vmatpush2.bf16.msra.mxu0 0
    %327 = vmatprep.subr.bf16.mxu0 0
    %328 = vmatpush2.bf16.msra.mxu0 0
    %329 = vmatprep.subr.bf16.mxu0 0
    %330 = vmatpush2.bf16.msra.mxu0 0
    %331 = vmatprep.subr.bf16.mxu0 0
    %332 = vmatpush2.bf16.msra.mxu0 0
    %333 = vmatprep.mubr.bf16.mxu0 0
    %334 = vmatmul.mubr.bf16.gmra.mxu0 %v299
    %v335 = vpop.f32.mrf.mxu0
    %v336 = vadd.f32 0.0, %v335
    %v337 = vpop.f32.mrf.mxu0
    %v338 = vadd.f32 0.0, %v337
    %v339 = vpop.f32.mrf.mxu0
    %v340 = vpop.f32.mrf.mxu0
    %341 = vdwg.mxu0
    %v344 = vrot.slane %v336, 6
    %v345 = vrot.slane %v338, 6
    %v348 = vadd.f32 %v211, %v344
    %v349 = vadd.f32 %v212, %v345
    %v350 = vxor.u32 %v348, 2147483648
    %v351 = vxor.u32 %v349, 2147483648
    %v352 = vmul.f32 %v350, 1.442695
    %v353 = vpow.pop %v352
    %v354 = vmul.f32 %v351, 1.442695
    %v355 = vpow.pop %v354
    %v356 = vadd.f32 %v353, 1.0
    %v357 = vadd.f32 %v355, 1.0
    %v358 = vrcp.pop %v356
    %v359 = vmul.f32 1.0, %v358
    %v360 = vrcp.pop %v357
    %v361 = vmul.f32 1.0, %v360
    %v362 = vtanh.pop %v349
    %v364 = vrot.slane %v246, 6
    %v366 = vmul.f32 %v359, %v364
    %368 = vrot.lane.b32.xlu0 %v362, 64
    %v369 = vpop.permute.xlu0 %368
    %v371 = vmul.f32 %v359, %v369
    %373 = vrot.lane.b32.xlu0 %v371, 64
    %v374 = vpop.permute.xlu0 %373
    %v376 = vadd.f32 %v366, %v374
    %v377 = vtanh.pop %v376
    %379 = vrot.lane.b32.xlu0 %v377, 64
    %v380 = vpop.permute.xlu0 %379
    %v382 = vmul.f32 %v361, %v380
    %vm383 = vcmask 257026
    %384 = vst.msk [vmem:[#allocation2] sm:$0xc] %vm383, %v382
    %vm385 = vcmask 519426
    %386 = vst.msk [vmem:[#allocation2 + $0xa] sm:$0xc] %vm385, %v382
    %v387 = vpack.c.bf16 %v382, %v382
    %v389 = vrot.slane %v387, 1
    %v391 = vsel %vm187, %v389, 0
    %393 = vmatprep.subr.bf16.mxu0 0
    %394 = vmatpush1.bf16.msra.mxu0 0
    %395 = vmatprep.subr.bf16.mxu0 0
    %396 = vmatpush1.bf16.msra.mxu0 0
    %397 = vmatprep.subr.bf16.mxu0 0
    %398 = vmatpush1.bf16.msra.mxu0 0
    %399 = vmatprep.subr.bf16.mxu0 0
    %400 = vmatpush1.bf16.msra.mxu0 0
    %401 = vmatprep.subr.bf16.mxu0 %v289
    %402 = vmatpush1.bf16.msra.mxu0 %v288
    %403 = vmatprep.subr.bf16.mxu0 %v287
    %404 = vmatpush1.bf16.msra.mxu0 %v286
    %405 = vmatprep.subr.bf16.mxu0 %v285
    %406 = vmatpush1.bf16.msra.mxu0 %v284
    %407 = vmatprep.subr.bf16.mxu0 %v283
    %408 = vmatpush1.bf16.msra.mxu0 %v282
    %409 = vmatprep.subr.bf16.mxu0 0
    %410 = vmatpush2.bf16.msra.mxu0 0
    %411 = vmatprep.subr.bf16.mxu0 0
    %412 = vmatpush2.bf16.msra.mxu0 0
    %413 = vmatprep.subr.bf16.mxu0 0
    %414 = vmatpush2.bf16.msra.mxu0 0
    %415 = vmatprep.subr.bf16.mxu0 0
    %416 = vmatpush2.bf16.msra.mxu0 0
    %417 = vmatprep.subr.bf16.mxu0 0
    %418 = vmatpush2.bf16.msra.mxu0 0
    %419 = vmatprep.subr.bf16.mxu0 0
    %420 = vmatpush2.bf16.msra.mxu0 0
    %421 = vmatprep.subr.bf16.mxu0 0
    %422 = vmatpush2.bf16.msra.mxu0 0
    %423 = vmatprep.subr.bf16.mxu0 0
    %424 = vmatpush2.bf16.msra.mxu0 0
    %425 = vmatprep.mubr.bf16.mxu0 0
    %426 = vmatmul.mubr.bf16.gmra.mxu0 %v391
    %v427 = vpop.f32.mrf.mxu0
    %v428 = vadd.f32 0.0, %v427
    %v429 = vpop.f32.mrf.mxu0
    %v430 = vadd.f32 0.0, %v429
    %v431 = vpop.f32.mrf.mxu0
    %v432 = vpop.f32.mrf.mxu0
    %433 = vdwg.mxu0
    %v436 = vrot.slane %v428, 4
    %v437 = vrot.slane %v430, 4
    %v440 = vadd.f32 %v211, %v436
    %v441 = vadd.f32 %v212, %v437
    %v442 = vxor.u32 %v440, 2147483648
    %v443 = vxor.u32 %v441, 2147483648
    %v444 = vmul.f32 %v442, 1.442695
    %v445 = vpow.pop %v444
    %v446 = vmul.f32 %v443, 1.442695
    %v447 = vpow.pop %v446
    %v448 = vadd.f32 %v445, 1.0
    %v449 = vadd.f32 %v447, 1.0
    %v450 = vrcp.pop %v448
    %v451 = vmul.f32 1.0, %v450
    %v452 = vrcp.pop %v449
    %v453 = vmul.f32 1.0, %v452
    %v454 = vtanh.pop %v441
    %v456 = vrot.slane %v376, 6
    %v458 = vmul.f32 %v451, %v456
    %460 = vrot.lane.b32.xlu0 %v454, 64
    %v461 = vpop.permute.xlu0 %460
    %v463 = vmul.f32 %v451, %v461
    %465 = vrot.lane.b32.xlu0 %v463, 64
    %v466 = vpop.permute.xlu0 %465
    %v468 = vadd.f32 %v458, %v466
    %v469 = vtanh.pop %v468
    %471 = vrot.lane.b32.xlu0 %v469, 64
    %v472 = vpop.permute.xlu0 %471
    %v474 = vmul.f32 %v453, %v472
    %vm475 = vcmask 259076
    %476 = vst.msk [vmem:[#allocation2] sm:$0x30] %vm475, %v474
    %vm477 = vcmask 521476
    %478 = vst.msk [vmem:[#allocation2 + $0x6] sm:$0x30] %vm477, %v474
    %v479 = vpack.c.bf16 %v474, %v474
    %v481 = vrot.slane %v479, 2
    %v483 = vsel %vm187, %v481, 0
    %485 = vmatprep.subr.bf16.mxu0 0
    %486 = vmatpush1.bf16.msra.mxu0 0
    %487 = vmatprep.subr.bf16.mxu0 0
    %488 = vmatpush1.bf16.msra.mxu0 0
    %489 = vmatprep.subr.bf16.mxu0 0
    %490 = vmatpush1.bf16.msra.mxu0 0
    %491 = vmatprep.subr.bf16.mxu0 0
    %492 = vmatpush1.bf16.msra.mxu0 0
    %493 = vmatprep.subr.bf16.mxu0 %v289
    %494 = vmatpush1.bf16.msra.mxu0 %v288
    %495 = vmatprep.subr.bf16.mxu0 %v287
    %496 = vmatpush1.bf16.msra.mxu0 %v286
    %497 = vmatprep.subr.bf16.mxu0 %v285
    %498 = vmatpush1.bf16.msra.mxu0 %v284
    %499 = vmatprep.subr.bf16.mxu0 %v283
    %500 = vmatpush1.bf16.msra.mxu0 %v282
    %501 = vmatprep.subr.bf16.mxu0 0
    %502 = vmatpush2.bf16.msra.mxu0 0
    %503 = vmatprep.subr.bf16.mxu0 0
    %504 = vmatpush2.bf16.msra.mxu0 0
    %505 = vmatprep.subr.bf16.mxu0 0
    %506 = vmatpush2.bf16.msra.mxu0 0
    %507 = vmatprep.subr.bf16.mxu0 0
    %508 = vmatpush2.bf16.msra.mxu0 0
    %509 = vmatprep.subr.bf16.mxu0 0
    %510 = vmatpush2.bf16.msra.mxu0 0
    %511 = vmatprep.subr.bf16.mxu0 0
    %512 = vmatpush2.bf16.msra.mxu0 0
    %513 = vmatprep.subr.bf16.mxu0 0
    %514 = vmatpush2.bf16.msra.mxu0 0
    %515 = vmatprep.subr.bf16.mxu0 0
    %516 = vmatpush2.bf16.msra.mxu0 0
    %517 = vmatprep.mubr.bf16.mxu0 0
    %518 = vmatmul.mubr.bf16.gmra.mxu0 %v483
    %v519 = vpop.f32.mrf.mxu0
    %v520 = vadd.f32 0.0, %v519
    %v521 = vpop.f32.mrf.mxu0
    %v522 = vadd.f32 0.0, %v521
    %v523 = vpop.f32.mrf.mxu0
    %v524 = vpop.f32.mrf.mxu0
    %525 = vdwg.mxu0
    %v528 = vrot.slane %v520, 2
    %v529 = vrot.slane %v522, 2
    %v532 = vadd.f32 %v211, %v528
    %v533 = vadd.f32 %v212, %v529
    %v534 = vxor.u32 %v532, 2147483648
    %v535 = vxor.u32 %v533, 2147483648
    %v536 = vmul.f32 %v534, 1.442695
    %v537 = vpow.pop %v536
    %v538 = vmul.f32 %v535, 1.442695
    %v539 = vpow.pop %v538
    %v540 = vadd.f32 %v537, 1.0
    %v541 = vadd.f32 %v539, 1.0
    %v542 = vrcp.pop %v540
    %v543 = vmul.f32 1.0, %v542
    %v544 = vrcp.pop %v541
    %v545 = vmul.f32 1.0, %v544
    %v546 = vtanh.pop %v533
    %v548 = vrot.slane %v468, 6
    %v550 = vmul.f32 %v543, %v548
    %552 = vrot.lane.b32.xlu0 %v546, 64
    %v553 = vpop.permute.xlu0 %552
    %v555 = vmul.f32 %v543, %v553
    %557 = vrot.lane.b32.xlu0 %v555, 64
    %v558 = vpop.permute.xlu0 %557
    %v560 = vadd.f32 %v550, %v558
    %v561 = vtanh.pop %v560
    %563 = vrot.lane.b32.xlu0 %v561, 64
    %v564 = vpop.permute.xlu0 %563
    %v566 = vmul.f32 %v545, %v564
    %vm567 = vcmask 261126
    %568 = vst.msk [vmem:[#allocation2] sm:$0xc0] %vm567, %v566
    %vm569 = vcmask 523526
    %570 = vst.msk [vmem:[#allocation2 + $0x2] sm:$0xc0] %vm569, %v566
    %v571 = vpack.c.bf16 %v566, %v566
    %v573 = vrot.slane %v571, 3
    %v575 = vsel %vm187, %v573, 0
    %577 = vmatprep.subr.bf16.mxu0 0
    %578 = vmatpush1.bf16.msra.mxu0 0
    %579 = vmatprep.subr.bf16.mxu0 0
    %580 = vmatpush1.bf16.msra.mxu0 0
    %581 = vmatprep.subr.bf16.mxu0 0
    %582 = vmatpush1.bf16.msra.mxu0 0
    %583 = vmatprep.subr.bf16.mxu0 0
    %584 = vmatpush1.bf16.msra.mxu0 0
    %585 = vmatprep.subr.bf16.mxu0 %v289
    %586 = vmatpush1.bf16.msra.mxu0 %v288
    %587 = vmatprep.subr.bf16.mxu0 %v287
    %588 = vmatpush1.bf16.msra.mxu0 %v286
    %589 = vmatprep.subr.bf16.mxu0 %v285
    %590 = vmatpush1.bf16.msra.mxu0 %v284
    %591 = vmatprep.subr.bf16.mxu0 %v283
    %592 = vmatpush1.bf16.msra.mxu0 %v282
    %593 = vmatprep.subr.bf16.mxu0 0
    %594 = vmatpush2.bf16.msra.mxu0 0
    %595 = vmatprep.subr.bf16.mxu0 0
    %596 = vmatpush2.bf16.msra.mxu0 0
    %597 = vmatprep.subr.bf16.mxu0 0
    %598 = vmatpush2.bf16.msra.mxu0 0
    %599 = vmatprep.subr.bf16.mxu0 0
    %600 = vmatpush2.bf16.msra.mxu0 0
    %601 = vmatprep.subr.bf16.mxu0 0
    %602 = vmatpush2.bf16.msra.mxu0 0
    %603 = vmatprep.subr.bf16.mxu0 0
    %604 = vmatpush2.bf16.msra.mxu0 0
    %605 = vmatprep.subr.bf16.mxu0 0
    %606 = vmatpush2.bf16.msra.mxu0 0
    %607 = vmatprep.subr.bf16.mxu0 0
    %608 = vmatpush2.bf16.msra.mxu0 0
    %609 = vmatprep.mubr.bf16.mxu0 0
    %610 = vmatmul.mubr.bf16.gmra.mxu0 %v575
    %v611 = vpop.f32.mrf.mxu0
    %v612 = vadd.f32 0.0, %v611
    %v613 = vpop.f32.mrf.mxu0
    %v614 = vadd.f32 0.0, %v613
    %v615 = vpop.f32.mrf.mxu0
    %v616 = vpop.f32.mrf.mxu0
    %617 = vdwg.mxu0
    %v618 = vadd.f32 %v213, %v612
    %v619 = vadd.f32 %v214, %v614
    %v620 = vxor.u32 %v618, 2147483648
    %v621 = vxor.u32 %v619, 2147483648
    %v622 = vmul.f32 %v620, 1.442695
    %v623 = vpow.pop %v622
    %v624 = vmul.f32 %v621, 1.442695
    %v625 = vpow.pop %v624
    %v626 = vadd.f32 %v623, 1.0
    %v627 = vadd.f32 %v625, 1.0
    %v628 = vrcp.pop %v626
    %v629 = vmul.f32 1.0, %v628
    %v630 = vrcp.pop %v627
    %v631 = vmul.f32 1.0, %v630
    %v632 = vtanh.pop %v619
    %v634 = vrot.slane %v560, 6
    %v636 = vmul.f32 %v629, %v634
    %638 = vrot.lane.b32.xlu0 %v632, 64
    %v639 = vpop.permute.xlu0 %638
    %v641 = vmul.f32 %v629, %v639
    %643 = vrot.lane.b32.xlu0 %v641, 64
    %v644 = vpop.permute.xlu0 %643
    %v646 = vadd.f32 %v636, %v644
    %v647 = vtanh.pop %v646
    %649 = vrot.lane.b32.xlu0 %v647, 64
    %v650 = vpop.permute.xlu0 %649
    %v652 = vmul.f32 %v631, %v650
    %653 = vst.msk [vmem:[#allocation2 + $0x8] sm:$0x3] %vm253, %v652
    %654 = vst.msk [vmem:[#allocation2 + $0x6] sm:$0x3] %vm255, %v652
    %v655 = vpack.c.bf16 %v652, %v652
    %v657 = vsel %vm187, %v655, 0
    %659 = vmatprep.subr.bf16.mxu0 0
    %660 = vmatpush1.bf16.msra.mxu0 0
    %661 = vmatprep.subr.bf16.mxu0 0
    %662 = vmatpush1.bf16.msra.mxu0 0
    %663 = vmatprep.subr.bf16.mxu0 0
    %664 = vmatpush1.bf16.msra.mxu0 0
    %665 = vmatprep.subr.bf16.mxu0 0
    %666 = vmatpush1.bf16.msra.mxu0 0
    %667 = vmatprep.subr.bf16.mxu0 %v289
    %668 = vmatpush1.bf16.msra.mxu0 %v288
    %669 = vmatprep.subr.bf16.mxu0 %v287
    %670 = vmatpush1.bf16.msra.mxu0 %v286
    %671 = vmatprep.subr.bf16.mxu0 %v285
    %672 = vmatpush1.bf16.msra.mxu0 %v284
    %673 = vmatprep.subr.bf16.mxu0 %v283
    %674 = vmatpush1.bf16.msra.mxu0 %v282
    %675 = vmatprep.subr.bf16.mxu0 0
    %676 = vmatpush2.bf16.msra.mxu0 0
    %677 = vmatprep.subr.bf16.mxu0 0
    %678 = vmatpush2.bf16.msra.mxu0 0
    %679 = vmatprep.subr.bf16.mxu0 0
    %680 = vmatpush2.bf16.msra.mxu0 0
    %681 = vmatprep.subr.bf16.mxu0 0
    %682 = vmatpush2.bf16.msra.mxu0 0
    %683 = vmatprep.subr.bf16.mxu0 0
    %684 = vmatpush2.bf16.msra.mxu0 0
    %685 = vmatprep.subr.bf16.mxu0 0
    %686 = vmatpush2.bf16.msra.mxu0 0
    %687 = vmatprep.subr.bf16.mxu0 0
    %688 = vmatpush2.bf16.msra.mxu0 0
    %689 = vmatprep.subr.bf16.mxu0 0
    %690 = vmatpush2.bf16.msra.mxu0 0
    %691 = vmatprep.mubr.bf16.mxu0 0
    %692 = vmatmul.mubr.bf16.gmra.mxu0 %v657
    %v693 = vpop.f32.mrf.mxu0
    %v694 = vadd.f32 0.0, %v693
    %v695 = vpop.f32.mrf.mxu0
    %v696 = vadd.f32 0.0, %v695
    %v697 = vpop.f32.mrf.mxu0
    %v698 = vpop.f32.mrf.mxu0
    %699 = vdwg.mxu0
    %v702 = vrot.slane %v694, 6
    %v703 = vrot.slane %v696, 6
    %v706 = vadd.f32 %v213, %v702
    %v707 = vadd.f32 %v214, %v703
    %v708 = vxor.u32 %v706, 2147483648
    %v709 = vxor.u32 %v707, 2147483648
    %v710 = vmul.f32 %v708, 1.442695
    %v711 = vpow.pop %v710
    %v712 = vmul.f32 %v709, 1.442695
    %v713 = vpow.pop %v712
    %v714 = vadd.f32 %v711, 1.0
    %v715 = vadd.f32 %v713, 1.0
    %v716 = vrcp.pop %v714
    %v717 = vmul.f32 1.0, %v716
    %v718 = vrcp.pop %v715
    %v719 = vmul.f32 1.0, %v718
    %v720 = vtanh.pop %v707
    %v722 = vrot.slane %v646, 6
    %v724 = vmul.f32 %v717, %v722
    %726 = vrot.lane.b32.xlu0 %v720, 64
    %v727 = vpop.permute.xlu0 %726
    %v729 = vmul.f32 %v717, %v727
    %731 = vrot.lane.b32.xlu0 %v729, 64
    %v732 = vpop.permute.xlu0 %731
    %v734 = vadd.f32 %v724, %v732
    %v735 = vtanh.pop %v734
    %737 = vrot.lane.b32.xlu0 %v735, 64
    %v738 = vpop.permute.xlu0 %737
    %v740 = vmul.f32 %v719, %v738
    %741 = vst.msk [vmem:[#allocation2 + $0x8] sm:$0xc] %vm383, %v740
    %742 = vst.msk [vmem:[#allocation2 + $0x2] sm:$0xc] %vm385, %v740
    %v743 = vpack.c.bf16 %v740, %v740
    %v745 = vrot.slane %v743, 1
    %v747 = vsel %vm187, %v745, 0
    %749 = vmatprep.subr.bf16.mxu0 0
    %750 = vmatpush1.bf16.msra.mxu0 0
    %751 = vmatprep.subr.bf16.mxu0 0
    %752 = vmatpush1.bf16.msra.mxu0 0
    %753 = vmatprep.subr.bf16.mxu0 0
    %754 = vmatpush1.bf16.msra.mxu0 0
    %755 = vmatprep.subr.bf16.mxu0 0
    %756 = vmatpush1.bf16.msra.mxu0 0
    %757 = vmatprep.subr.bf16.mxu0 %v289
    %758 = vmatpush1.bf16.msra.mxu0 %v288
    %759 = vmatprep.subr.bf16.mxu0 %v287
    %760 = vmatpush1.bf16.msra.mxu0 %v286
    %761 = vmatprep.subr.bf16.mxu0 %v285
    %762 = vmatpush1.bf16.msra.mxu0 %v284
    %763 = vmatprep.subr.bf16.mxu0 %v283
    %764 = vmatpush1.bf16.msra.mxu0 %v282
    %765 = vmatprep.subr.bf16.mxu0 0
    %766 = vmatpush2.bf16.msra.mxu0 0
    %767 = vmatprep.subr.bf16.mxu0 0
    %768 = vmatpush2.bf16.msra.mxu0 0
    %769 = vmatprep.subr.bf16.mxu0 0
    %770 = vmatpush2.bf16.msra.mxu0 0
    %771 = vmatprep.subr.bf16.mxu0 0
    %772 = vmatpush2.bf16.msra.mxu0 0
    %773 = vmatprep.subr.bf16.mxu0 0
    %774 = vmatpush2.bf16.msra.mxu0 0
    %775 = vmatprep.subr.bf16.mxu0 0
    %776 = vmatpush2.bf16.msra.mxu0 0
    %777 = vmatprep.subr.bf16.mxu0 0
    %778 = vmatpush2.bf16.msra.mxu0 0
    %779 = vmatprep.subr.bf16.mxu0 0
    %780 = vmatpush2.bf16.msra.mxu0 0
    %781 = vmatprep.mubr.bf16.mxu0 0
    %782 = vmatmul.mubr.bf16.gmra.mxu0 %v747
    %v783 = vpop.f32.mrf.mxu0
    %v784 = vadd.f32 0.0, %v783
    %v785 = vpop.f32.mrf.mxu0
    %v786 = vadd.f32 0.0, %v785
    %v787 = vpop.f32.mrf.mxu0
    %v788 = vpop.f32.mrf.mxu0
    %789 = vdwg.mxu0
    %v792 = vrot.slane %v784, 4
    %v793 = vrot.slane %v786, 4
    %v796 = vadd.f32 %v213, %v792
    %v797 = vadd.f32 %v214, %v793
    %v798 = vxor.u32 %v796, 2147483648
    %v799 = vxor.u32 %v797, 2147483648
    %v800 = vmul.f32 %v798, 1.442695
    %v801 = vpow.pop %v800
    %v802 = vmul.f32 %v799, 1.442695
    %v803 = vpow.pop %v802
    %v804 = vadd.f32 %v801, 1.0
    %v805 = vadd.f32 %v803, 1.0
    %v806 = vrcp.pop %v804
    %v807 = vmul.f32 1.0, %v806
    %v808 = vrcp.pop %v805
    %v809 = vmul.f32 1.0, %v808
    %v810 = vtanh.pop %v797
    %v812 = vrot.slane %v734, 6
    %v814 = vmul.f32 %v807, %v812
    %816 = vrot.lane.b32.xlu0 %v810, 64
    %v817 = vpop.permute.xlu0 %816
    %v819 = vmul.f32 %v807, %v817
    %821 = vrot.lane.b32.xlu0 %v819, 64
    %v822 = vpop.permute.xlu0 %821
    %v824 = vadd.f32 %v814, %v822
    %v825 = vtanh.pop %v824
    %827 = vrot.lane.b32.xlu0 %v825, 64
    %v828 = vpop.permute.xlu0 %827
    %v830 = vmul.f32 %v809, %v828
    %831 = vst.msk [vmem:[#allocation2 + $0x8] sm:$0x30] %vm475, %v830
    %832 = vst.msk [vmem:[#allocation2 - $0x2] sm:$0x30] %vm477, %v830
    %v833 = vpack.c.bf16 %v830, %v830
    %v835 = vrot.slane %v833, 2
    %v837 = vsel %vm187, %v835, 0
    %839 = vmatprep.subr.bf16.mxu0 0
    %840 = vmatpush1.bf16.msra.mxu0 0
    %841 = vmatprep.subr.bf16.mxu0 0
    %842 = vmatpush1.bf16.msra.mxu0 0
    %843 = vmatprep.subr.bf16.mxu0 0
    %844 = vmatpush1.bf16.msra.mxu0 0
    %845 = vmatprep.subr.bf16.mxu0 0
    %846 = vmatpush1.bf16.msra.mxu0 0
    %847 = vmatprep.subr.bf16.mxu0 %v289
    %848 = vmatpush1.bf16.msra.mxu0 %v288
    %849 = vmatprep.subr.bf16.mxu0 %v287
    %850 = vmatpush1.bf16.msra.mxu0 %v286
    %851 = vmatprep.subr.bf16.mxu0 %v285
    %852 = vmatpush1.bf16.msra.mxu0 %v284
    %853 = vmatprep.subr.bf16.mxu0 %v283
    %854 = vmatpush1.bf16.msra.mxu0 %v282
    %855 = vmatprep.subr.bf16.mxu0 0
    %856 = vmatpush2.bf16.msra.mxu0 0
    %857 = vmatprep.subr.bf16.mxu0 0
    %858 = vmatpush2.bf16.msra.mxu0 0
    %859 = vmatprep.subr.bf16.mxu0 0
    %860 = vmatpush2.bf16.msra.mxu0 0
    %861 = vmatprep.subr.bf16.mxu0 0
    %862 = vmatpush2.bf16.msra.mxu0 0
    %863 = vmatprep.subr.bf16.mxu0 0
    %864 = vmatpush2.bf16.msra.mxu0 0
    %865 = vmatprep.subr.bf16.mxu0 0
    %866 = vmatpush2.bf16.msra.mxu0 0
    %867 = vmatprep.subr.bf16.mxu0 0
    %868 = vmatpush2.bf16.msra.mxu0 0
    %869 = vmatprep.subr.bf16.mxu0 0
    %870 = vmatpush2.bf16.msra.mxu0 0
    %871 = vmatprep.mubr.bf16.mxu0 0
    %872 = vmatmul.mubr.bf16.gmra.mxu0 %v837
    %v873 = vpop.f32.mrf.mxu0
    %v874 = vadd.f32 0.0, %v873
    %v875 = vpop.f32.mrf.mxu0
    %v876 = vadd.f32 0.0, %v875
    %v877 = vpop.f32.mrf.mxu0
    %v878 = vpop.f32.mrf.mxu0
    %879 = vdwg.mxu0
    %v882 = vrot.slane %v874, 2
    %v883 = vrot.slane %v876, 2
    %v886 = vadd.f32 %v213, %v882
    %v887 = vadd.f32 %v214, %v883
    %v888 = vxor.u32 %v886, 2147483648
    %v889 = vxor.u32 %v887, 2147483648
    %v890 = vmul.f32 %v888, 1.442695
    %v891 = vpow.pop %v890
    %v892 = vmul.f32 %v889, 1.442695
    %v893 = vpow.pop %v892
    %v894 = vadd.f32 %v891, 1.0
    %v895 = vadd.f32 %v893, 1.0
    %v896 = vrcp.pop %v894
    %v897 = vmul.f32 1.0, %v896
    %v898 = vrcp.pop %v895
    %v899 = vmul.f32 1.0, %v898
    %v900 = vtanh.pop %v887
    %v902 = vrot.slane %v824, 6
    %v904 = vmul.f32 %v897, %v902
    %906 = vrot.lane.b32.xlu0 %v900, 64
    %v907 = vpop.permute.xlu0 %906
    %v909 = vmul.f32 %v897, %v907
    %911 = vrot.lane.b32.xlu0 %v909, 64
    %v912 = vpop.permute.xlu0 %911
    %v914 = vadd.f32 %v904, %v912
    %v915 = vtanh.pop %v914
    %917 = vrot.lane.b32.xlu0 %v915, 64
    %v918 = vpop.permute.xlu0 %917
    %v920 = vmul.f32 %v899, %v918
    %921 = vst.msk [vmem:[#allocation2 + $0x8] sm:$0xc0] %vm567, %v920
    %922 = vst.msk [vmem:[#allocation2 - $0x6] sm:$0xc0] %vm569, %v920
    // Predicated region
    $region26: #{bilstm_pallas.1} parent=1 // pred_check
      _
    $region27: #{bilstm_pallas.1} parent=1 // pred_check_branch
      %924 = sbr.rel (0) target = $region29
    $region28: #{bilstm_pallas.1} parent=1 // pred_region
      %s926 = ssub.s32 256, 256
      %927 = vsyncadd [#allocation3], %s926
      %s928 = sshll.u32 [#allocation2], 4
      %s929 = int_to_ptr.vmem [resolvable:$true] %s928
      %934 = dma.vmem_to_hbm [thread:$0]  %s929, 256, %s6, [#allocation3], 128, 128, 8
    $region29: #{bilstm_pallas.1} parent=1 // pred_fallthru
      _
    // Predicated region
    $region30: #{bilstm_pallas.1} parent=1 // pred_check
      _
    $region31: #{bilstm_pallas.1} parent=1 // pred_check_branch
      %936 = sbr.rel (0) target = $region33
    $region32: #{bilstm_pallas.1} parent=1 // pred_region
      %937 = dma.done [#allocation3], 256
    $region33: #{bilstm_pallas.1} parent=1 // pred_fallthru
      _
    %938 = vsyncpa [#allocation3], 1

</llo_original>
